<compile_context>
chip_gen: v6e
topology: v6e:2x2x1
jax: 0.10.0
libtpu: 0.0.40
codegen_flags: <defaults>
</compile_context>

<pallas_src>
import functools

import jax
import jax.numpy as jnp
from jax.experimental import pallas as pl
from jax.experimental.pallas import tpu as pltpu


def _cdiv(a, b):
    return -(-a // b)


def _round_up(a, b):
    return _cdiv(a, b) * b


def _pick_divisor_tile(total, target, align):
    """Largest multiple of `align` dividing `total`, <= target (or `total` if unaligned)."""
    if total % align != 0:
        return total
    t = max(align, (min(target, total) // align) * align)
    while total % t != 0:
        t -= align
    return t


def _tpu_generation():
    try:
        kind = jax.devices()[0].device_kind.lower()
    except Exception:
        return "unknown"
    if "v7" in kind or "tpu7" in kind:
        return "v7x"
    if "v6" in kind:
        return "v6e"
    if "v5 lite" in kind or "v5e" in kind or "v5lite" in kind:
        return "v5e"
    return "unknown"


def _ffn_kernel(x_ref, w1_ref, b1_ref, w2_ref, b2_ref, o_ref, *scratch):
    """One (token-tile i, hidden-tile h) grid step of Linear -> Swish -> Linear.

    x_ref  : (tm, dim)       token tile (constant over the hidden axis)
    w1_ref : (dim, th)       slab of the first weight
    b1_ref : (1, th)         slab of the first bias
    w2_ref : (th, dim)       slab of the second weight
    b2_ref : (1, dim)        second bias (constant)
    o_ref  : (tm, dim)       output tile (resident across the hidden axis)
    scratch: optional (tm, dim) f32 accumulator (only when o_ref is not f32).
    """
    acc_ref = scratch[0] if scratch else o_ref
    h_idx = pl.program_id(1)

    @pl.when(h_idx == 0)
    def _init():
        acc_ref[...] = jnp.zeros_like(acc_ref)

    # First matmul (f32 MXU accumulation) + bias + Swish, all in f32.
    h = jnp.dot(x_ref[...], w1_ref[...], preferred_element_type=jnp.float32)
    h = h + b1_ref[...].astype(jnp.float32)
    h = h * jax.nn.sigmoid(h)  # Swish; sigmoid lowers to EUP exp + reciprocal.

    # Second matmul: accumulate this hidden slab's contribution in f32.
    acc_ref[...] += jnp.dot(h.astype(w2_ref.dtype), w2_ref[...],
                            preferred_element_type=jnp.float32)

    @pl.when(h_idx == pl.num_programs(1) - 1)
    def _finalize():
        o_ref[...] = (acc_ref[...] + b2_ref[...].astype(jnp.float32)
                      ).astype(o_ref.dtype)


@functools.partial(jax.jit, static_argnames=("matmul_dtype", "tm", "th"))
def feed_forward(x, w1, b1, w2, b2, *, matmul_dtype=None, tm=None, th=None):
    """x: (B, S, dim) -> (B, S, dim).  Linear(dim->hidden) -> Swish -> Linear(hidden->dim)."""
    B, S, dim = x.shape
    hidden = w1.shape[1]
    assert w1.shape == (dim, hidden) and w2.shape == (hidden, dim)
    assert b1.shape[-1] == hidden and b2.shape[-1] == dim
    M = B * S

    out_dtype = x.dtype
    mm_dtype = jnp.dtype(matmul_dtype) if matmul_dtype is not None else jnp.dtype(x.dtype)
    mm_itemsize = mm_dtype.itemsize
    out_itemsize = jnp.dtype(out_dtype).itemsize
    use_acc_scratch = jnp.dtype(out_dtype) != jnp.dtype(jnp.float32)

    # ---- generation-aware tile targets & VMEM budget -------------------------
    gen = _tpu_generation()
    if gen == "v6e":
        # Weight slabs are re-streamed once per token tile; tm~1024 keeps the
        # weight-stream arithmetic intensity above the ~660 flop/byte v6e roofline.
        tm_target, th_target, vmem_cap = 1024, 512, 100 * 1024 * 1024
    elif gen == "v5e":
        tm_target = 512 if mm_itemsize == 4 else 256
        th_target, vmem_cap = 512, 100 * 1024 * 1024
    elif gen == "v7x":
        # 64 MiB physical VMEM: smaller hidden slabs, leave compiler scratch headroom.
        tm_target, th_target, vmem_cap = 512, 256, 56 * 1024 * 1024
    else:
        tm_target, th_target, vmem_cap = 512, 512, 64 * 1024 * 1024

    tm_sel = tm if tm is not None else min(tm_target, _round_up(M, 8))
    th_sel = th if th is not None else _pick_divisor_tile(hidden, th_target, 128)

    # Megacore: keep >= 2 token tiles so the "parallel" axis shards across TensorCores.
    if tm is None and _cdiv(M, tm_sel) < 2:
        half = _round_up(_cdiv(M, 2), 8)
        if half >= 256:
            tm_sel = half

    def _footprint(tm_, th_):
        acc = tm_ * dim * 4 if use_acc_scratch else 0
        return (2 * tm_ * dim * mm_itemsize          # x tile (double-buffered)
                + 2 * tm_ * dim * out_itemsize       # out tile
                + 2 * dim * th_ * mm_itemsize        # w1 slab
                + 2 * th_ * dim * mm_itemsize        # w2 slab
                + 2 * (th_ + dim) * 4                # biases
                + tm_ * th_ * 4                      # f32 intermediate h
                + acc)

    # Shrink auto-picked tiles until the working set fits this generation's budget.
    while _footprint(tm_sel, th_sel) > vmem_cap:
        if th is None and th_sel > 128 and hidden % 128 == 0:
            new_th = _pick_divisor_tile(hidden, max(128, th_sel // 2), 128)
            if new_th < th_sel:
                th_sel = new_th
                continue
        if tm is None and tm_sel > 256:
            tm_sel = max(256, (tm_sel // 2) // 8 * 8)
            continue
        break

    vmem_limit_bytes = int(min(vmem_cap,
                               max(32 * 1024 * 1024,
                                   int(_footprint(tm_sel, th_sel) * 1.3))))

    # ---- pad the token axis (instead of shrinking tm) for awkward B*S --------
    M_pad = _round_up(M, tm_sel)
    n_tok_tiles = M_pad // tm_sel
    n_hid_tiles = hidden // th_sel

    x2d = x.reshape(M, dim).astype(mm_dtype)
    if M_pad != M:
        x2d = jnp.pad(x2d, ((0, M_pad - M), (0, 0)))
    w1c = w1.astype(mm_dtype)
    w2c = w2.astype(mm_dtype)
    b1_2d = b1.reshape(1, hidden)
    b2_2d = b2.reshape(1, dim)

    cost = pl.CostEstimate(
        flops=4 * M_pad * dim * hidden,                 # two matmuls
        transcendentals=M_pad * hidden,                 # sigmoid exp
        bytes_accessed=(M_pad * dim * mm_itemsize       # x read
                        + M_pad * dim * out_itemsize    # out write
                        # w1/w2 are re-streamed once per token tile:
                        + n_tok_tiles * 2 * dim * hidden * mm_itemsize
                        + n_tok_tiles * (hidden + dim) * b1.dtype.itemsize),
    )

    scratch_shapes = ((pltpu.VMEM((tm_sel, dim), jnp.float32),)
                      if use_acc_scratch else ())

    out2d = pl.pallas_call(
        _ffn_kernel,
        out_shape=jax.ShapeDtypeStruct((M_pad, dim), out_dtype),
        grid_spec=pltpu.PrefetchScalarGridSpec(
            num_scalar_prefetch=0,
            grid=(n_tok_tiles, n_hid_tiles),            # (token tiles, hidden tiles)
            in_specs=[
                pl.BlockSpec((tm_sel, dim), lambda i, h: (i, 0)),   # x tile
                pl.BlockSpec((dim, th_sel), lambda i, h: (0, h)),   # w1 slab
                pl.BlockSpec((1, th_sel), lambda i, h: (0, h)),     # b1 slab
                pl.BlockSpec((th_sel, dim), lambda i, h: (h, 0)),   # w2 slab
                pl.BlockSpec((1, dim), lambda i, h: (0, 0)),        # b2
            ],
            out_specs=pl.BlockSpec((tm_sel, dim), lambda i, h: (i, 0)),
            scratch_shapes=scratch_shapes,
        ),
        compiler_params=pltpu.CompilerParams(
            dimension_semantics=("parallel", "arbitrary"),
            vmem_limit_bytes=vmem_limit_bytes,
        ),
        cost_estimate=cost,
    )(x2d, w1c, b1_2d, w2c, b2_2d)

    return out2d[:M].reshape(B, S, dim)


def init_params(key, dim, mult=4, dtype=jnp.float32):
    """Deterministic parameter init mimicking nn.Linear (uniform +/- 1/sqrt(fan_in))."""
    hidden = dim * mult
    k1, k2, k3, k4 = jax.random.split(key, 4)
    bound1 = 1.0 / (dim ** 0.5)
    bound2 = 1.0 / (hidden ** 0.5)
    w1 = jax.random.uniform(k1, (dim, hidden), dtype, -bound1, bound1)
    b1 = jax.random.uniform(k2, (hidden,), dtype, -bound1, bound1)
    w2 = jax.random.uniform(k3, (hidden, dim), dtype, -bound2, bound2)
    b2 = jax.random.uniform(k4, (dim,), dtype, -bound2, bound2)
    return w1, b1, w2, b2


def feed_forward_ref(x, w1, b1, w2, b2):
    hp = jax.lax.Precision.HIGHEST
    h = jnp.einsum("bsd,dh->bsh", x, w1, precision=hp) + b1
    h = h * jax.nn.sigmoid(h)
    return jnp.einsum("bsh,hd->bsd", h, w2, precision=hp) + b2


if __name__ == "__main__":
    key = jax.random.PRNGKey(0)
    k_x, k_p, k_x2 = jax.random.split(key, 3)

    # Small shapes consistent with the module: dim=32, mult=4 -> hidden=128.
    B, S, dim, mult = 2, 8, 32, 4
    x = jax.random.normal(k_x, (B, S, dim), jnp.float32)
    w1, b1, w2, b2 = init_params(k_p, dim, mult)
    ref = feed_forward_ref(x, w1, b1, w2, b2)

    # f32 path (no cast).  Tolerance covers MXU f32 pass-decomposition differences
    # versus the HIGHEST-precision XLA einsum reference.
    out = jax.block_until_ready(feed_forward(x, w1, b1, w2, b2))
    assert out.shape == (B, S, dim)
    assert jnp.allclose(out, ref, atol=2e-2, rtol=2e-2), "f32 path mismatch vs reference"

    # bf16-MXU path (recommended for f32 models): cast x/w once, f32 accumulation.
    out_bf16 = jax.block_until_ready(
        feed_forward(x, w1, b1, w2, b2, matmul_dtype=jnp.bfloat16))
    assert out_bf16.shape == (B, S, dim)
    assert jnp.allclose(out_bf16, ref, atol=6e-2, rtol=6e-2), "bf16 path mismatch vs reference"

    # Awkward token count (B*S = 15) exercises the pad-to-tile path.
    B2, S2 = 3, 5
    x2 = jax.random.normal(k_x2, (B2, S2, dim), jnp.float32)
    ref2 = feed_forward_ref(x2, w1, b1, w2, b2)
    out2 = jax.block_until_ready(feed_forward(x2, w1, b1, w2, b2))
    assert out2.shape == (B2, S2, dim)
    assert jnp.allclose(out2, ref2, atol=2e-2, rtol=2e-2), "padded path mismatch vs reference"

    print("KERNEL_OK")
</pallas_src>

<mosaic_0001>
module attributes {stable_mosaic.version = 11 : i64} {
  func.func @_ffn_kernel(%arg0: i32, %arg1: i32, %arg2: memref<16x32xf32, #tpu.memory_space<vmem>>, %arg3: memref<32x128xf32, #tpu.memory_space<vmem>>, %arg4: memref<1x128xf32, #tpu.memory_space<vmem>>, %arg5: memref<128x32xf32, #tpu.memory_space<vmem>>, %arg6: memref<1x32xf32, #tpu.memory_space<vmem>>, %arg7: memref<16x32xf32, #tpu.memory_space<vmem>>) attributes {dimension_semantics = [#tpu.dimension_semantics<parallel>, #tpu.dimension_semantics<arbitrary>], iteration_bounds = array<i64: 1, 1>, scalar_prefetch = 0 : i64, scratch_operands = 0 : i64, tpu.core_type = #tpu.core_type<tc>, window_params = [{transform_indices = @transform_0, window_bounds = array<i64: 16, 32>}, {transform_indices = @transform_1, window_bounds = array<i64: 32, 128>}, {transform_indices = @transform_2, window_bounds = array<i64: 1, 128>}, {transform_indices = @transform_3, window_bounds = array<i64: 128, 32>}, {pipeline_mode = #tpu.pipeline_mode<synchronous>, transform_indices = @transform_4, window_bounds = array<i64: 1, 32>}, {transform_indices = @transform_5, window_bounds = array<i64: 16, 32>}]} {
    %c0_i32 = arith.constant 0 : i32
    %0 = arith.cmpi eq, %arg1, %c0_i32 : i32
    %1 = arith.extui %0 : i1 to i32
    %c0_i32_0 = arith.constant 0 : i32
    %2 = arith.cmpi ne, %1, %c0_i32_0 : i32
    scf.if %2 {
      %cst_16 = arith.constant 0.000000e+00 : f32
      %23 = vector.broadcast %cst_16 : f32 to vector<16x32xf32>
      %c0_17 = arith.constant 0 : index
      %c0_18 = arith.constant 0 : index
      %24 = vector.load %arg7[%c0_17, %c0_18] : memref<16x32xf32, #tpu.memory_space<vmem>>, vector<16x32xf32>
      tpu.vector_store %arg7[%c0_17, %c0_18], %23 {strides = array<i32>} : memref<16x32xf32, #tpu.memory_space<vmem>>, vector<16x32xf32>,
    } else {
    }
    %c0 = arith.constant 0 : index
    %c0_1 = arith.constant 0 : index
    %3 = vector.load %arg2[%c0, %c0_1] : memref<16x32xf32, #tpu.memory_space<vmem>>, vector<16x32xf32>
    %c0_2 = arith.constant 0 : index
    %c0_3 = arith.constant 0 : index
    %4 = vector.load %arg3[%c0_2, %c0_3] : memref<32x128xf32, #tpu.memory_space<vmem>>, vector<32x128xf32>
    %cst = arith.constant dense<0.000000e+00> : vector<16x128xf32>
    %5 = tpu.matmul %3, %4, %cst {dimension_numbers = #tpu.dot_dimension_numbers<[1], [0], [0], [1], [0, 0, 1, 1], [], []>} : vector<16x32xf32>, vector<32x128xf32>, vector<16x128xf32> -> vector<16x128xf32>
    %c0_4 = arith.constant 0 : index
    %c0_5 = arith.constant 0 : index
    %6 = vector.load %arg4[%c0_4, %c0_5] : memref<1x128xf32, #tpu.memory_space<vmem>>, vector<1x128xf32>
    %7 = vector.broadcast %6 : vector<1x128xf32> to vector<16x128xf32>
    %8 = arith.addf %5, %7 : vector<16x128xf32>
    %9 = arith.negf %8 : vector<16x128xf32>
    %10 = math.exp %9 : vector<16x128xf32>
    %cst_6 = arith.constant 1.000000e+00 : f32
    %11 = vector.broadcast %cst_6 : f32 to vector<16x128xf32>
    %12 = arith.addf %11, %10 : vector<16x128xf32>
    %13 = arith.divf %11, %12 : vector<16x128xf32>
    %14 = arith.mulf %8, %13 : vector<16x128xf32>
    %c0_7 = arith.constant 0 : index
    %c0_8 = arith.constant 0 : index
    %15 = vector.load %arg7[%c0_7, %c0_8] : memref<16x32xf32, #tpu.memory_space<vmem>>, vector<16x32xf32>
    %c0_9 = arith.constant 0 : index
    %c0_10 = arith.constant 0 : index
    %16 = vector.load %arg5[%c0_9, %c0_10] : memref<128x32xf32, #tpu.memory_space<vmem>>, vector<128x32xf32>
    %cst_11 = arith.constant dense<0.000000e+00> : vector<16x32xf32>
    %17 = tpu.matmul %14, %16, %cst_11 {dimension_numbers = #tpu.dot_dimension_numbers<[1], [0], [0], [1], [0, 0, 1, 1], [], []>} : vector<16x128xf32>, vector<128x32xf32>, vector<16x32xf32> -> vector<16x32xf32>
    %18 = arith.addf %15, %17 : vector<16x32xf32>
    %c0_12 = arith.constant 0 : index
    %c0_13 = arith.constant 0 : index
    %19 = vector.load %arg7[%c0_12, %c0_13] : memref<16x32xf32, #tpu.memory_space<vmem>>, vector<16x32xf32>
    tpu.vector_store %arg7[%c0_12, %c0_13], %18 {strides = array<i32>} : memref<16x32xf32, #tpu.memory_space<vmem>>, vector<16x32xf32>,
    %c0_i32_14 = arith.constant 0 : i32
    %20 = arith.cmpi eq, %arg1, %c0_i32_14 : i32
    %21 = arith.extui %20 : i1 to i32
    %c0_i32_15 = arith.constant 0 : i32
    %22 = arith.cmpi ne, %21, %c0_i32_15 : i32
    scf.if %22 {
      %c0_16 = arith.constant 0 : index
      %c0_17 = arith.constant 0 : index
      %23 = vector.load %arg7[%c0_16, %c0_17] : memref<16x32xf32, #tpu.memory_space<vmem>>, vector<16x32xf32>
      %c0_18 = arith.constant 0 : index
      %c0_19 = arith.constant 0 : index
      %24 = vector.load %arg6[%c0_18, %c0_19] : memref<1x32xf32, #tpu.memory_space<vmem>>, vector<1x32xf32>
      %25 = vector.broadcast %24 : vector<1x32xf32> to vector<16x32xf32>
      %26 = arith.addf %23, %25 : vector<16x32xf32>
      %c0_20 = arith.constant 0 : index
      %c0_21 = arith.constant 0 : index
      %27 = vector.load %arg7[%c0_20, %c0_21] : memref<16x32xf32, #tpu.memory_space<vmem>>, vector<16x32xf32>
      tpu.vector_store %arg7[%c0_20, %c0_21], %26 {strides = array<i32>} : memref<16x32xf32, #tpu.memory_space<vmem>>, vector<16x32xf32>,
    } else {
    }
    return
  }
  func.func @transform_0(%arg0: i32, %arg1: i32) -> (i32, i32) {
    %c0_i32 = arith.constant 0 : i32
    %c0_i32_0 = arith.constant 0 : i32
    return %arg0, %c0_i32 : i32, i32
  }
  func.func @transform_1(%arg0: i32, %arg1: i32) -> (i32, i32) {
    %c0_i32 = arith.constant 0 : i32
    %c0_i32_0 = arith.constant 0 : i32
    return %c0_i32, %arg1 : i32, i32
  }
  func.func @transform_2(%arg0: i32, %arg1: i32) -> (i32, i32) {
    %c0_i32 = arith.constant 0 : i32
    %c0_i32_0 = arith.constant 0 : i32
    return %c0_i32, %arg1 : i32, i32
  }
  func.func @transform_3(%arg0: i32, %arg1: i32) -> (i32, i32) {
    %c0_i32 = arith.constant 0 : i32
    %c0_i32_0 = arith.constant 0 : i32
    return %arg1, %c0_i32 : i32, i32
  }
  func.func @transform_4(%arg0: i32, %arg1: i32) -> (i32, i32) {
    %c0_i32 = arith.constant 0 : i32
    %c0_i32_0 = arith.constant 0 : i32
    %c0_i32_1 = arith.constant 0 : i32
    return %c0_i32, %c0_i32_0 : i32, i32
  }
  func.func @transform_5(%arg0: i32, %arg1: i32) -> (i32, i32) {
    %c0_i32 = arith.constant 0 : i32
    %c0_i32_0 = arith.constant 0 : i32
    return %arg0, %c0_i32 : i32, i32
  }
}

</mosaic_0001>

<llo_original>
// kernel: feed_forward.1
$region0: #{feed_forward.1}
  #allocation0 [shape = 'u32[]', space=smem, size = 0x4, offset = 0x4, fixed_abs, tag = 'smem constant byte address 0x4 - core index']
  #allocation1 [shape = 'u32[144,128]{1,0:T(1,128)}', space=vmem, size = 0x12000, scoped, tag = 'internal scratch']
  %s0 = inlined_call_operand.vmem [shape: f32[16,32], index: 0, kind: input, shape index: {}]
  %s1 = inlined_call_operand.vmem [shape: f32[32,128], index: 1, kind: input, shape index: {}]
  %s2 = inlined_call_operand.vmem [shape: f32[1,128], index: 2, kind: input, shape index: {}]
  %s3 = inlined_call_operand.vmem [shape: f32[128,32], index: 3, kind: input, shape index: {}]
  %s4 = inlined_call_operand.vmem [shape: f32[1,32], index: 4, kind: input, shape index: {}]
  %s5 = inlined_call_operand.hbm [shape: f32[16,32], index: 5, kind: output, shape index: {}]
  %s6 = sld [smem:[#allocation0]]
  $region38: #{feed_forward.1} parent=0
    _
  %s8 = ssub.s32 1, %s6
  %s9 = scalar_select 0, %s8, %s6
  $region1: #{feed_forward.1} parent=0
    #allocation2 [shape = 'u8[8192]{0}', space=vmem, size = 0x2000, scoped, tag = 'output window, operand 0, single buffered']
    #allocation3 [shape = 's32[1]{0}', space=sflag, size = 0x4, scoped, tag = 'scoped memory for feed_forward.1']
    %10 = vsyncpa [#allocation3], 0
    // Predicated region
    $region2: #{feed_forward.1} parent=1 // pred_check
      _
    $region3: #{feed_forward.1} parent=1 // pred_check_branch
      %12 = sbr.rel (0) target = $region5
    $region4: #{feed_forward.1} parent=1 // pred_region
      _
    $region5: #{feed_forward.1} parent=1 // pred_fallthru
      _
    // Predicated region
    $region6: #{feed_forward.1} parent=1 // pred_check
      _
    $region7: #{feed_forward.1} parent=1 // pred_check_branch
      %14 = sbr.rel (0) target = $region9
    $region8: #{feed_forward.1} parent=1 // pred_region
      _
    $region9: #{feed_forward.1} parent=1 // pred_fallthru
      _
    // Predicated region
    $region10: #{feed_forward.1} parent=1 // pred_check
      _
    $region11: #{feed_forward.1} parent=1 // pred_check_branch
      %16 = sbr.rel (0) target = $region13
    $region12: #{feed_forward.1} parent=1 // pred_region
      _
    $region13: #{feed_forward.1} parent=1 // pred_fallthru
      _
    // Predicated region
    $region14: #{feed_forward.1} parent=1 // pred_check
      _
    $region15: #{feed_forward.1} parent=1 // pred_check_branch
      %18 = sbr.rel (0) target = $region17
    $region16: #{feed_forward.1} parent=1 // pred_region
      _
    $region17: #{feed_forward.1} parent=1 // pred_fallthru
      _
    // Predicated region
    $region18: #{feed_forward.1} parent=1 // pred_check
      _
    $region19: #{feed_forward.1} parent=1 // pred_check_branch
      %20 = sbr.rel (0) target = $region21
    $region20: #{feed_forward.1} parent=1 // pred_region
      _
    $region21: #{feed_forward.1} parent=1 // pred_fallthru
      _
    %p21 = scmp.eq.s32.totalorder 0, 0
    // Predicated region
    $region22: #{feed_forward.1} parent=1 // pred_check
      %p22 = pneg %p21
    $region23: #{feed_forward.1} parent=1 // pred_check_branch
      %24 = sbr.rel (%p22) target = $region25
    $region24: #{feed_forward.1} parent=1 // pred_region
      %vm25 = vcmask 261120
      %26 = vst.msk [vmem:[#allocation2] sm:$0xff] %vm25, 0.0
      %27 = vst.msk [vmem:[#allocation2 + $0x8] sm:$0xff] %vm25, 0.0
    $region25: #{feed_forward.1} parent=1 // pred_fallthru
      _
    %v28 = vld [vmem:[%s0] sm:$0xff]
    %v29 = vld [vmem:[%s0 + $0x8] sm:$0xff]
    %v30 = vld [vmem:[%s1] sm:$0xff]
    %v31 = vld [vmem:[%s1 + $0x8] sm:$0xff]
    %v32 = vld [vmem:[%s1 + $0x10] sm:$0xff]
    %v33 = vld [vmem:[%s1 + $0x18] sm:$0xff]
    %v34 = vld [vmem:[%s2] sm:$0x1]
    %v36 = vlaneseq
    %v37 = vshrl.u32 %v36, 7
    %v38 = vsub.s32 0, %v37
    %v39 = vrot.slane %v34, %v38
    %vm41 = vcmask 261120
    %v43 = vsel %vm41, %v28, 0
    %v46 = vsel %vm41, %v29, 0
    %48 = vmatprep.subr.mxu0 0.0
    %49 = vmatpush1.msra.mxu0 0.0
    %50 = vmatprep.subr.mxu0 0.0
    %51 = vmatpush1.msra.mxu0 0.0
    %52 = vmatprep.subr.mxu0 0.0
    %53 = vmatpush1.msra.mxu0 0.0
    %54 = vmatprep.subr.mxu0 0.0
    %55 = vmatpush1.msra.mxu0 0.0
    %56 = vmatprep.subr.mxu0 0.0
    %57 = vmatpush1.msra.mxu0 0.0
    %58 = vmatprep.subr.mxu0 0.0
    %59 = vmatpush1.msra.mxu0 0.0
    %60 = vmatprep.subr.mxu0 0.0
    %61 = vmatpush1.msra.mxu0 0.0
    %62 = vmatprep.subr.mxu0 0.0
    %63 = vmatpush1.msra.mxu0 0.0
    %64 = vmatprep.subr.mxu0 0.0
    %65 = vmatpush1.msra.mxu0 0.0
    %66 = vmatprep.subr.mxu0 0.0
    %67 = vmatpush1.msra.mxu0 0.0
    %68 = vmatprep.subr.mxu0 0.0
    %69 = vmatpush1.msra.mxu0 0.0
    %70 = vmatprep.subr.mxu0 0.0
    %71 = vmatpush1.msra.mxu0 0.0
    %72 = vmatprep.subr.mxu0 0.0
    %73 = vmatpush1.msra.mxu0 %v33
    %74 = vmatprep.subr.mxu0 0.0
    %75 = vmatpush1.msra.mxu0 %v32
    %76 = vmatprep.subr.mxu0 0.0
    %77 = vmatpush1.msra.mxu0 %v31
    %78 = vmatprep.subr.mxu0 0.0
    %79 = vmatpush1.msra.mxu0 %v30
    %80 = vmatprep.subr.mxu0 0.0
    %81 = vmatpush2.msra.mxu0 0.0
    %82 = vmatprep.subr.mxu0 0.0
    %83 = vmatpush2.msra.mxu0 0.0
    %84 = vmatprep.subr.mxu0 0.0
    %85 = vmatpush2.msra.mxu0 0.0
    %86 = vmatprep.subr.mxu0 0.0
    %87 = vmatpush2.msra.mxu0 0.0
    %88 = vmatprep.subr.mxu0 0.0
    %89 = vmatpush2.msra.mxu0 0.0
    %90 = vmatprep.subr.mxu0 0.0
    %91 = vmatpush2.msra.mxu0 0.0
    %92 = vmatprep.subr.mxu0 0.0
    %93 = vmatpush2.msra.mxu0 0.0
    %94 = vmatprep.subr.mxu0 0.0
    %95 = vmatpush2.msra.mxu0 0.0
    %96 = vmatprep.subr.mxu0 0.0
    %97 = vmatpush2.msra.mxu0 0.0
    %98 = vmatprep.subr.mxu0 0.0
    %99 = vmatpush2.msra.mxu0 0.0
    %100 = vmatprep.subr.mxu0 0.0
    %101 = vmatpush2.msra.mxu0 0.0
    %102 = vmatprep.subr.mxu0 0.0
    %103 = vmatpush2.msra.mxu0 0.0
    %104 = vmatprep.subr.mxu0 0.0
    %105 = vmatpush2.msra.mxu0 0.0
    %106 = vmatprep.subr.mxu0 0.0
    %107 = vmatpush2.msra.mxu0 0.0
    %108 = vmatprep.subr.mxu0 0.0
    %109 = vmatpush2.msra.mxu0 0.0
    %110 = vmatprep.subr.mxu0 0.0
    %111 = vmatpush2.msra.mxu0 0.0
    %112 = vmatprep.mubr.f32.mxu0 0.0
    %113 = vmatmul.mubr.f32.gmra.mxu0 %v43
    %v114 = vpop.f32.mrf.mxu0
    %v115 = vadd.f32 %v39, %v114
    %v116 = vpop.f32.mrf.mxu0
    %117 = vmatprep.mubr.f32.mxu0 0.0
    %118 = vmatmul.mubr.f32.gmra.mxu0 %v46
    %v119 = vpop.f32.mrf.mxu0
    %v120 = vadd.f32 %v39, %v119
    %v121 = vpop.f32.mrf.mxu0
    %122 = vdwg.mxu0
    %v123 = vxor.u32 %v115, 2147483648
    %v124 = vxor.u32 %v120, 2147483648
    %v125 = vmul.f32 %v123, 1.442695
    %v126 = vpow.pop %v125
    %v127 = vmul.f32 %v124, 1.442695
    %v128 = vpow.pop %v127
    %v129 = vadd.f32 %v126, 1.0
    %v130 = vadd.f32 %v128, 1.0
    %v131 = vrcp.pop %v129
    %v132 = vmul.f32 1.0, %v131
    %v133 = vrcp.pop %v130
    %v134 = vmul.f32 1.0, %v133
    %v135 = vmul.f32 %v115, %v132
    %v136 = vmul.f32 %v120, %v134
    %v137 = vld [vmem:[#allocation2] sm:$0xff]
    %v138 = vld [vmem:[#allocation2 + $0x8] sm:$0xff]
    %v139 = vld [vmem:[%s3] sm:$0xff]
    %v140 = vld [vmem:[%s3 + $0x8] sm:$0xff]
    %v141 = vld [vmem:[%s3 + $0x10] sm:$0xff]
    %v142 = vld [vmem:[%s3 + $0x18] sm:$0xff]
    %v143 = vld [vmem:[%s3 + $0x20] sm:$0xff]
    %v144 = vld [vmem:[%s3 + $0x28] sm:$0xff]
    %v145 = vld [vmem:[%s3 + $0x30] sm:$0xff]
    %v146 = vld [vmem:[%s3 + $0x38] sm:$0xff]
    %v147 = vld [vmem:[%s3 + $0x40] sm:$0xff]
    %v148 = vld [vmem:[%s3 + $0x48] sm:$0xff]
    %v149 = vld [vmem:[%s3 + $0x50] sm:$0xff]
    %v150 = vld [vmem:[%s3 + $0x58] sm:$0xff]
    %v151 = vld [vmem:[%s3 + $0x60] sm:$0xff]
    %v152 = vld [vmem:[%s3 + $0x68] sm:$0xff]
    %v153 = vld [vmem:[%s3 + $0x70] sm:$0xff]
    %v154 = vld [vmem:[%s3 + $0x78] sm:$0xff]
    %155 = vmatprep.subr.mxu0 0.0
    %156 = vmatpush1.msra.mxu0 %v154
    %157 = vmatprep.subr.mxu0 0.0
    %158 = vmatpush1.msra.mxu0 %v153
    %159 = vmatprep.subr.mxu0 0.0
    %160 = vmatpush1.msra.mxu0 %v152
    %161 = vmatprep.subr.mxu0 0.0
    %162 = vmatpush1.msra.mxu0 %v151
    %163 = vmatprep.subr.mxu0 0.0
    %164 = vmatpush1.msra.mxu0 %v150
    %165 = vmatprep.subr.mxu0 0.0
    %166 = vmatpush1.msra.mxu0 %v149
    %167 = vmatprep.subr.mxu0 0.0
    %168 = vmatpush1.msra.mxu0 %v148
    %169 = vmatprep.subr.mxu0 0.0
    %170 = vmatpush1.msra.mxu0 %v147
    %171 = vmatprep.subr.mxu0 0.0
    %172 = vmatpush1.msra.mxu0 %v146
    %173 = vmatprep.subr.mxu0 0.0
    %174 = vmatpush1.msra.mxu0 %v145
    %175 = vmatprep.subr.mxu0 0.0
    %176 = vmatpush1.msra.mxu0 %v144
    %177 = vmatprep.subr.mxu0 0.0
    %178 = vmatpush1.msra.mxu0 %v143
    %179 = vmatprep.subr.mxu0 0.0
    %180 = vmatpush1.msra.mxu0 %v142
    %181 = vmatprep.subr.mxu0 0.0
    %182 = vmatpush1.msra.mxu0 %v141
    %183 = vmatprep.subr.mxu0 0.0
    %184 = vmatpush1.msra.mxu0 %v140
    %185 = vmatprep.subr.mxu0 0.0
    %186 = vmatpush1.msra.mxu0 %v139
    %187 = vmatprep.subr.mxu0 0.0
    %188 = vmatpush2.msra.mxu0 0.0
    %189 = vmatprep.subr.mxu0 0.0
    %190 = vmatpush2.msra.mxu0 0.0
    %191 = vmatprep.subr.mxu0 0.0
    %192 = vmatpush2.msra.mxu0 0.0
    %193 = vmatprep.subr.mxu0 0.0
    %194 = vmatpush2.msra.mxu0 0.0
    %195 = vmatprep.subr.mxu0 0.0
    %196 = vmatpush2.msra.mxu0 0.0
    %197 = vmatprep.subr.mxu0 0.0
    %198 = vmatpush2.msra.mxu0 0.0
    %199 = vmatprep.subr.mxu0 0.0
    %200 = vmatpush2.msra.mxu0 0.0
    %201 = vmatprep.subr.mxu0 0.0
    %202 = vmatpush2.msra.mxu0 0.0
    %203 = vmatprep.subr.mxu0 0.0
    %204 = vmatpush2.msra.mxu0 0.0
    %205 = vmatprep.subr.mxu0 0.0
    %206 = vmatpush2.msra.mxu0 0.0
    %207 = vmatprep.subr.mxu0 0.0
    %208 = vmatpush2.msra.mxu0 0.0
    %209 = vmatprep.subr.mxu0 0.0
    %210 = vmatpush2.msra.mxu0 0.0
    %211 = vmatprep.subr.mxu0 0.0
    %212 = vmatpush2.msra.mxu0 0.0
    %213 = vmatprep.subr.mxu0 0.0
    %214 = vmatpush2.msra.mxu0 0.0
    %215 = vmatprep.subr.mxu0 0.0
    %216 = vmatpush2.msra.mxu0 0.0
    %217 = vmatprep.subr.mxu0 0.0
    %218 = vmatpush2.msra.mxu0 0.0
    %219 = vmatprep.mubr.f32.mxu0 0.0
    %220 = vmatmul.mubr.f32.gmra.mxu0 %v135
    %v221 = vpop.f32.mrf.mxu0
    %v222 = vadd.f32 0.0, %v221
    %v223 = vpop.f32.mrf.mxu0
    %224 = vmatprep.mubr.f32.mxu0 0.0
    %225 = vmatmul.mubr.f32.gmra.mxu0 %v136
    %v226 = vpop.f32.mrf.mxu0
    %v227 = vadd.f32 0.0, %v226
    %v228 = vpop.f32.mrf.mxu0
    %229 = vdwg.mxu0
    %v230 = vadd.f32 %v137, %v222
    %v231 = vadd.f32 %v138, %v227
    %232 = vst.msk [vmem:[#allocation2] sm:$0xff] %vm41, %v230
    %233 = vst.msk [vmem:[#allocation2 + $0x8] sm:$0xff] %vm41, %v231
    // Predicated region
    $region26: #{feed_forward.1} parent=1 // pred_check
      %p234 = pneg %p21
    $region27: #{feed_forward.1} parent=1 // pred_check_branch
      %236 = sbr.rel (%p234) target = $region29
    $region28: #{feed_forward.1} parent=1 // pred_region
      %v237 = vld [vmem:[#allocation2] sm:$0xff]
      %v238 = vld [vmem:[#allocation2 + $0x8] sm:$0xff]
      %v239 = vld [vmem:[%s4] sm:$0x1]
      %v241 = vlaneseq
      %v242 = vshrl.u32 %v241, 7
      %v243 = vsub.s32 0, %v242
      %v244 = vrot.slane %v239, %v243
      %v246 = vadd.f32 %v237, %v244
      %v247 = vadd.f32 %v238, %v244
      %248 = vst.msk [vmem:[#allocation2] sm:$0xff] %vm41, %v246
      %249 = vst.msk [vmem:[#allocation2 + $0x8] sm:$0xff] %vm41, %v247
    $region29: #{feed_forward.1} parent=1 // pred_fallthru
      _
    // Predicated region
    $region30: #{feed_forward.1} parent=1 // pred_check
      _
    $region31: #{feed_forward.1} parent=1 // pred_check_branch
      %251 = sbr.rel (0) target = $region33
    $region32: #{feed_forward.1} parent=1 // pred_region
      %s253 = ssub.s32 256, 256
      %254 = vsyncadd [#allocation3], %s253
      %s255 = sshll.u32 [#allocation2], 4
      %s256 = int_to_ptr.vmem [resolvable:$true] %s255
      %261 = dma.vmem_to_hbm [thread:$0]  %s256, 256, %s5, [#allocation3], 128, 128, 8
    $region33: #{feed_forward.1} parent=1 // pred_fallthru
      _
    // Predicated region
    $region34: #{feed_forward.1} parent=1 // pred_check
      _
    $region35: #{feed_forward.1} parent=1 // pred_check_branch
      %263 = sbr.rel (0) target = $region37
    $region36: #{feed_forward.1} parent=1 // pred_region
      %264 = dma.done [#allocation3], 256
    $region37: #{feed_forward.1} parent=1 // pred_fallthru
      _
    %265 = vsyncpa [#allocation3], 1

</llo_original>
